<compile_context>
chip_gen: v7x
topology: tpu7x:2x2x1
jax: 0.10.0
libtpu: 0.0.40
codegen_flags: <defaults>
</compile_context>

<pallas_src>
import functools

import jax
import jax.numpy as jnp
import numpy as np
from jax import lax
from jax.experimental import pallas as pl
from jax.experimental.pallas import tpu as pltpu

# Layer sizes from the PyTorch module.
SIZES = [33, 62, 62, 128, 128, 1]
IN_FEATURES = SIZES[0]
NUM_LAYERS = len(SIZES) - 1
PAD_F = 128                      # padded feature width (lane width)
DEFAULT_TILE_B = 4096            # max rows per grid step (multiple of 128)
MIN_TILES = 4                    # aim for >= 4 grid steps on large batches


def _round_up(x, m):
    return (x + m - 1) // m * m


# --------------------------------------------------------------------------
# Kernel
# --------------------------------------------------------------------------
def _mlp_kernel(x_ref,
                w1_ref, w2_ref, w3_ref, w4_ref, w5t_ref,
                b_ref, o_ref):
    """One batch tile of the 5-layer MLP.

    x_ref  : (TILE_B, 33) f32            (streamed per grid step)
    w1..w4 : (K, 128)     bf16 zero-padded, VMEM-resident
    w5t_ref: (8, 128)     bf16, row 0 = final weight column, rows 1-7 zero
    b_ref  : (5, 128)     f32 packed biases, zero-padded, VMEM-resident
    o_ref  : (1, 1, TILE_B) f32           lane-dense output row
    """
    cdt = w1_ref.dtype                       # MXU operand dtype (bf16)
    biases = b_ref[...]                      # (5, 128) f32

    def dense_relu(h_cdt, w_ref, layer):
        y = jnp.dot(h_cdt, w_ref[...],
                    preferred_element_type=jnp.float32)        # MXU, f32 acc
        y = y + biases[layer:layer + 1, :]                     # f32 bias add
        return jnp.maximum(y.astype(cdt), 0)                   # bf16 ReLU

    h = x_ref[...].astype(cdt)                                 # (TILE_B, 33)
    h = dense_relu(h, w1_ref, 0)                               # (TILE_B, 128)
    h = dense_relu(h, w2_ref, 1)
    h = dense_relu(h, w3_ref, 2)
    h = dense_relu(h, w4_ref, 3)                               # (TILE_B, 128) bf16

    # Final 128->1 layer, lane-dense on the MXU:
    #   (8, 128) . (TILE_B, 128)^T  ->  (8, TILE_B) f32, only row 0 valid.
    y8 = lax.dot_general(w5t_ref[...], h,
                         (((1,), (1,)), ((), ())),
                         preferred_element_type=jnp.float32)   # (8, TILE_B)
    row = y8[0:1, :] + biases[4:5, 0:1]                        # (1, TILE_B)
    o_ref[...] = row.reshape(o_ref.shape)


# --------------------------------------------------------------------------
# Wrapper
# --------------------------------------------------------------------------
@functools.partial(jax.jit, static_argnames=("tile_b",))
def network_forward(x, ws, bias_pack, *, tile_b=DEFAULT_TILE_B):
    """x: (..., 33) f32.  Returns (-1, 1) f32, like the PyTorch module."""
    x2d = x.reshape(-1, IN_FEATURES).astype(jnp.float32)       # input.view(-1, 33)
    batch = x2d.shape[0]

    # Tile size: multiple of 128, capped so large batches get >= ~MIN_TILES
    # grid steps (pipelining + v7x dual-TensorCore sharding of the batch axis).
    per_tile_cap = _round_up(pl.cdiv(batch, MIN_TILES), 128)
    tile_b = max(128, min(_round_up(tile_b, 128), per_tile_cap))
    b_pad = _round_up(batch, tile_b)
    if b_pad != batch:
        x2d = jnp.pad(x2d, ((0, b_pad - batch), (0, 0)))       # zero tail rows
    num_tiles = b_pad // tile_b

    const2 = lambda i: (0, 0)                                  # resident params
    w_specs = [pl.BlockSpec(w.shape, const2) for w in ws]
    b_spec = pl.BlockSpec(bias_pack.shape, const2)

    out = pl.pallas_call(
        _mlp_kernel,
        out_shape=jax.ShapeDtypeStruct((num_tiles, 1, tile_b), jnp.float32),
        grid=(num_tiles,),
        in_specs=[pl.BlockSpec((tile_b, IN_FEATURES), lambda i: (i, 0))]
                 + w_specs + [b_spec],
        out_specs=pl.BlockSpec((1, 1, tile_b), lambda i: (i, 0, 0)),
        compiler_params=pltpu.CompilerParams(
            dimension_semantics=("parallel",)),                # v7x: 2 TCs
    )(x2d, *ws, bias_pack)

    # (num_tiles, 1, tile_b) -> (batch, 1)
    return out.reshape(-1)[:batch].reshape(batch, 1)


# --------------------------------------------------------------------------
# Parameter handling
# --------------------------------------------------------------------------
def init_params(key):
    """PyTorch-style init. Weights stored transposed vs torch: (in, out)."""
    params = []
    for i in range(NUM_LAYERS):
        fan_in, fan_out = SIZES[i], SIZES[i + 1]
        key, kw, kb = jax.random.split(key, 3)
        bound = 1.0 / np.sqrt(fan_in)
        w = jax.random.uniform(kw, (fan_in, fan_out), jnp.float32, -bound, bound)
        b = jax.random.uniform(kb, (fan_out,), jnp.float32, -bound, bound)
        params.append((w, b))
    return params


def prepare_params(params, compute_dtype=jnp.bfloat16):
    """One-time pad/cast.

    Layers 1-4: weights -> (K, 128) compute_dtype, zero-padded (layer 1 keeps
    K=33 to match the unpadded input lanes).
    Layer 5   : stored TRANSPOSED as (8, 128); row 0 holds the valid 128-long
                weight column, rows 1-7 are zero.
    Biases    : packed into one (5, 128) f32 array.
    """
    ws = []
    bias_pack = np.zeros((NUM_LAYERS, PAD_F), np.float32)
    for i, (w, b) in enumerate(params):
        w = np.asarray(w, np.float32)                 # (in, out)
        b = np.asarray(b, np.float32).reshape(-1)
        bias_pack[i, : b.shape[0]] = b
        if i == NUM_LAYERS - 1:
            wp = np.zeros((8, PAD_F), np.float32)     # (8, 128) transposed
            wp[: w.shape[1], : w.shape[0]] = w.T
        else:
            k_in = SIZES[0] if i == 0 else PAD_F
            wp = np.zeros((k_in, PAD_F), np.float32)
            wp[: w.shape[0], : w.shape[1]] = w
        ws.append(jnp.asarray(wp, compute_dtype))
    return tuple(ws), jnp.asarray(bias_pack)


# --------------------------------------------------------------------------
# References
# --------------------------------------------------------------------------
def reference_forward(x, params):
    """Pure-f32 JAX reference (exact module semantics)."""
    h = x.reshape(-1, IN_FEATURES)
    for i, (w, b) in enumerate(params):
        h = h @ w + b.reshape(1, -1)
        if i < NUM_LAYERS - 1:
            h = jnp.maximum(h, 0.0)
    return h


def reference_forward_quantized(x, params, compute_dtype=jnp.bfloat16):
    """Reference mirroring the kernel: bf16 operands / f32 accumulate,
    bf16 inter-layer activations."""
    h = x.reshape(-1, IN_FEATURES).astype(compute_dtype)
    for i, (w, b) in enumerate(params):
        y = jnp.dot(h, w.astype(compute_dtype),
                    preferred_element_type=jnp.float32) + b.reshape(1, -1)
        if i < NUM_LAYERS - 1:
            h = jnp.maximum(y.astype(compute_dtype), 0)
        else:
            h = y
    return h


# --------------------------------------------------------------------------
if __name__ == "__main__":
    key = jax.random.PRNGKey(0)
    key, kx, kx2 = jax.random.split(key, 3)

    params = init_params(key)
    ws, bias_pack = prepare_params(params, compute_dtype=jnp.bfloat16)

    # Small batch, shape implied by the module: input.view(-1, 33).
    x = jax.random.normal(kx, (8, 33), jnp.float32)
    out = jax.block_until_ready(network_forward(x, ws, bias_pack))
    assert out.shape == (8, 1)
    np.testing.assert_allclose(
        np.asarray(out), np.asarray(reference_forward_quantized(x, params)),
        rtol=2e-3, atol=2e-4)
    np.testing.assert_allclose(
        np.asarray(out), np.asarray(reference_forward(x, params)),
        rtol=5e-2, atol=5e-2)  # bf16-operand kernel vs exact-f32 reference

    # Larger, non-tile-multiple batch: exercises the multi-tile batch grid
    # (300 rows -> tile_b=128, 3 grid steps) and tail-row padding.
    x2 = jax.random.normal(kx2, (300, 33), jnp.float32)
    out2 = jax.block_until_ready(network_forward(x2, ws, bias_pack))
    assert out2.shape == (300, 1)
    np.testing.assert_allclose(
        np.asarray(out2), np.asarray(reference_forward_quantized(x2, params)),
        rtol=2e-3, atol=2e-4)

    print("KERNEL_OK")
</pallas_src>

<mosaic_0001>
module attributes {stable_mosaic.version = 11 : i64} {
  func.func @_mlp_kernel(%arg0: i32, %arg1: memref<128x33xf32, #tpu.memory_space<vmem>>, %arg2: memref<33x128xbf16, #tpu.memory_space<vmem>>, %arg3: memref<128x128xbf16, #tpu.memory_space<vmem>>, %arg4: memref<128x128xbf16, #tpu.memory_space<vmem>>, %arg5: memref<128x128xbf16, #tpu.memory_space<vmem>>, %arg6: memref<8x128xbf16, #tpu.memory_space<vmem>>, %arg7: memref<5x128xf32, #tpu.memory_space<vmem>>, %arg8: memref<1x1x128xf32, #tpu.memory_space<vmem>>) attributes {dimension_semantics = [#tpu.dimension_semantics<parallel>], iteration_bounds = array<i64: 1>, scalar_prefetch = 0 : i64, scratch_operands = 0 : i64, tpu.core_type = #tpu.core_type<tc>, window_params = [{transform_indices = @transform_0, window_bounds = array<i64: 128, 33>}, {pipeline_mode = #tpu.pipeline_mode<synchronous>, transform_indices = @transform_1, window_bounds = array<i64: 33, 128>}, {pipeline_mode = #tpu.pipeline_mode<synchronous>, transform_indices = @transform_2, window_bounds = array<i64: 128, 128>}, {pipeline_mode = #tpu.pipeline_mode<synchronous>, transform_indices = @transform_3, window_bounds = array<i64: 128, 128>}, {pipeline_mode = #tpu.pipeline_mode<synchronous>, transform_indices = @transform_4, window_bounds = array<i64: 128, 128>}, {pipeline_mode = #tpu.pipeline_mode<synchronous>, transform_indices = @transform_5, window_bounds = array<i64: 8, 128>}, {pipeline_mode = #tpu.pipeline_mode<synchronous>, transform_indices = @transform_6, window_bounds = array<i64: 5, 128>}, {transform_indices = @transform_7, window_bounds = array<i64: 1, 1, 128>}]} {
    %c0 = arith.constant 0 : index
    %c0_0 = arith.constant 0 : index
    %0 = vector.load %arg7[%c0, %c0_0] : memref<5x128xf32, #tpu.memory_space<vmem>>, vector<5x128xf32>
    %c0_1 = arith.constant 0 : index
    %c0_2 = arith.constant 0 : index
    %1 = vector.load %arg1[%c0_1, %c0_2] : memref<128x33xf32, #tpu.memory_space<vmem>>, vector<128x33xf32>
    %2 = arith.truncf %1 : vector<128x33xf32> to vector<128x33xbf16>
    %c0_3 = arith.constant 0 : index
    %c0_4 = arith.constant 0 : index
    %3 = vector.load %arg2[%c0_3, %c0_4] : memref<33x128xbf16, #tpu.memory_space<vmem>>, vector<33x128xbf16>
    %cst = arith.constant dense<0.000000e+00> : vector<128x128xf32>
    %4 = tpu.matmul %2, %3, %cst {dimension_numbers = #tpu.dot_dimension_numbers<[1], [0], [0], [1], [0, 0, 1, 1], [], []>} : vector<128x33xbf16>, vector<33x128xbf16>, vector<128x128xf32> -> vector<128x128xf32>
    %5 = vector.extract_strided_slice %0 {offsets = [0, 0], sizes = [1, 128], strides = [1, 1]} : vector<5x128xf32> to vector<1x128xf32>
    %6 = vector.broadcast %5 : vector<1x128xf32> to vector<128x128xf32>
    %7 = arith.addf %4, %6 : vector<128x128xf32>
    %8 = arith.truncf %7 : vector<128x128xf32> to vector<128x128xbf16>
    %cst_5 = arith.constant 0.000000e+00 : bf16
    %9 = vector.broadcast %cst_5 : bf16 to vector<128x128xbf16>
    %10 = arith.maximumf %8, %9 : vector<128x128xbf16>
    %c0_6 = arith.constant 0 : index
    %c0_7 = arith.constant 0 : index
    %11 = vector.load %arg3[%c0_6, %c0_7] : memref<128x128xbf16, #tpu.memory_space<vmem>>, vector<128x128xbf16>
    %cst_8 = arith.constant dense<0.000000e+00> : vector<128x128xf32>
    %12 = tpu.matmul %10, %11, %cst_8 {dimension_numbers = #tpu.dot_dimension_numbers<[1], [0], [0], [1], [0, 0, 1, 1], [], []>} : vector<128x128xbf16>, vector<128x128xbf16>, vector<128x128xf32> -> vector<128x128xf32>
    %13 = vector.extract_strided_slice %0 {offsets = [1, 0], sizes = [1, 128], strides = [1, 1]} : vector<5x128xf32> to vector<1x128xf32>
    %14 = vector.broadcast %13 : vector<1x128xf32> to vector<128x128xf32>
    %15 = arith.addf %12, %14 : vector<128x128xf32>
    %16 = arith.truncf %15 : vector<128x128xf32> to vector<128x128xbf16>
    %cst_9 = arith.constant 0.000000e+00 : bf16
    %17 = vector.broadcast %cst_9 : bf16 to vector<128x128xbf16>
    %18 = arith.maximumf %16, %17 : vector<128x128xbf16>
    %c0_10 = arith.constant 0 : index
    %c0_11 = arith.constant 0 : index
    %19 = vector.load %arg4[%c0_10, %c0_11] : memref<128x128xbf16, #tpu.memory_space<vmem>>, vector<128x128xbf16>
    %cst_12 = arith.constant dense<0.000000e+00> : vector<128x128xf32>
    %20 = tpu.matmul %18, %19, %cst_12 {dimension_numbers = #tpu.dot_dimension_numbers<[1], [0], [0], [1], [0, 0, 1, 1], [], []>} : vector<128x128xbf16>, vector<128x128xbf16>, vector<128x128xf32> -> vector<128x128xf32>
    %21 = vector.extract_strided_slice %0 {offsets = [2, 0], sizes = [1, 128], strides = [1, 1]} : vector<5x128xf32> to vector<1x128xf32>
    %22 = vector.broadcast %21 : vector<1x128xf32> to vector<128x128xf32>
    %23 = arith.addf %20, %22 : vector<128x128xf32>
    %24 = arith.truncf %23 : vector<128x128xf32> to vector<128x128xbf16>
    %cst_13 = arith.constant 0.000000e+00 : bf16
    %25 = vector.broadcast %cst_13 : bf16 to vector<128x128xbf16>
    %26 = arith.maximumf %24, %25 : vector<128x128xbf16>
    %c0_14 = arith.constant 0 : index
    %c0_15 = arith.constant 0 : index
    %27 = vector.load %arg5[%c0_14, %c0_15] : memref<128x128xbf16, #tpu.memory_space<vmem>>, vector<128x128xbf16>
    %cst_16 = arith.constant dense<0.000000e+00> : vector<128x128xf32>
    %28 = tpu.matmul %26, %27, %cst_16 {dimension_numbers = #tpu.dot_dimension_numbers<[1], [0], [0], [1], [0, 0, 1, 1], [], []>} : vector<128x128xbf16>, vector<128x128xbf16>, vector<128x128xf32> -> vector<128x128xf32>
    %29 = vector.extract_strided_slice %0 {offsets = [3, 0], sizes = [1, 128], strides = [1, 1]} : vector<5x128xf32> to vector<1x128xf32>
    %30 = vector.broadcast %29 : vector<1x128xf32> to vector<128x128xf32>
    %31 = arith.addf %28, %30 : vector<128x128xf32>
    %32 = arith.truncf %31 : vector<128x128xf32> to vector<128x128xbf16>
    %cst_17 = arith.constant 0.000000e+00 : bf16
    %33 = vector.broadcast %cst_17 : bf16 to vector<128x128xbf16>
    %34 = arith.maximumf %32, %33 : vector<128x128xbf16>
    %c0_18 = arith.constant 0 : index
    %c0_19 = arith.constant 0 : index
    %35 = vector.load %arg6[%c0_18, %c0_19] : memref<8x128xbf16, #tpu.memory_space<vmem>>, vector<8x128xbf16>
    %cst_20 = arith.constant dense<0.000000e+00> : vector<8x128xf32>
    %36 = tpu.matmul %35, %34, %cst_20 {dimension_numbers = #tpu.dot_dimension_numbers<[1], [1], [0], [0], [0, 0, 1, 0], [], []>} : vector<8x128xbf16>, vector<128x128xbf16>, vector<8x128xf32> -> vector<8x128xf32>
    %37 = vector.extract_strided_slice %36 {offsets = [0, 0], sizes = [1, 128], strides = [1, 1]} : vector<8x128xf32> to vector<1x128xf32>
    %38 = vector.extract_strided_slice %0 {offsets = [4, 0], sizes = [1, 1], strides = [1, 1]} : vector<5x128xf32> to vector<1x1xf32>
    %39 = vector.broadcast %38 : vector<1x1xf32> to vector<1x128xf32>
    %40 = arith.addf %37, %39 : vector<1x128xf32>
    %41 = vector.shape_cast %40 : vector<1x128xf32> to vector<1x1x128xf32>
    %c0_21 = arith.constant 0 : index
    %c0_22 = arith.constant 0 : index
    %c0_23 = arith.constant 0 : index
    %42 = vector.load %arg8[%c0_21, %c0_22, %c0_23] : memref<1x1x128xf32, #tpu.memory_space<vmem>>, vector<1x1x128xf32>
    tpu.vector_store %arg8[%c0_21, %c0_22, %c0_23], %41 {strides = array<i32>} : memref<1x1x128xf32, #tpu.memory_space<vmem>>, vector<1x1x128xf32>,
    return
  }
  func.func @transform_0(%arg0: i32) -> (i32, i32) {
    %c0_i32 = arith.constant 0 : i32
    %c0_i32_0 = arith.constant 0 : i32
    return %arg0, %c0_i32 : i32, i32
  }
  func.func @transform_1(%arg0: i32) -> (i32, i32) {
    %c0_i32 = arith.constant 0 : i32
    %c0_i32_0 = arith.constant 0 : i32
    %c0_i32_1 = arith.constant 0 : i32
    return %c0_i32, %c0_i32_0 : i32, i32
  }
  func.func @transform_2(%arg0: i32) -> (i32, i32) {
    %c0_i32 = arith.constant 0 : i32
    %c0_i32_0 = arith.constant 0 : i32
    %c0_i32_1 = arith.constant 0 : i32
    return %c0_i32, %c0_i32_0 : i32, i32
  }
  func.func @transform_3(%arg0: i32) -> (i32, i32) {
    %c0_i32 = arith.constant 0 : i32
    %c0_i32_0 = arith.constant 0 : i32
    %c0_i32_1 = arith.constant 0 : i32
    return %c0_i32, %c0_i32_0 : i32, i32
  }
  func.func @transform_4(%arg0: i32) -> (i32, i32) {
    %c0_i32 = arith.constant 0 : i32
    %c0_i32_0 = arith.constant 0 : i32
    %c0_i32_1 = arith.constant 0 : i32
    return %c0_i32, %c0_i32_0 : i32, i32
  }
  func.func @transform_5(%arg0: i32) -> (i32, i32) {
    %c0_i32 = arith.constant 0 : i32
    %c0_i32_0 = arith.constant 0 : i32
    %c0_i32_1 = arith.constant 0 : i32
    return %c0_i32, %c0_i32_0 : i32, i32
  }
  func.func @transform_6(%arg0: i32) -> (i32, i32) {
    %c0_i32 = arith.constant 0 : i32
    %c0_i32_0 = arith.constant 0 : i32
    %c0_i32_1 = arith.constant 0 : i32
    return %c0_i32, %c0_i32_0 : i32, i32
  }
  func.func @transform_7(%arg0: i32) -> (i32, i32, i32) {
    %c0_i32 = arith.constant 0 : i32
    %c0_i32_0 = arith.constant 0 : i32
    %c0_i32_1 = arith.constant 0 : i32
    return %arg0, %c0_i32, %c0_i32_0 : i32, i32, i32
  }
}

</mosaic_0001>

<llo_original>
// kernel: network_forward.1
$region0: #{network_forward.1}
  #allocation0 [shape = 'u32[]', space=smem, size = 0x4, offset = 0x4, fixed_abs, tag = 'smem constant byte address 0x4 - core index']
  #allocation1 [shape = 'u32[144,128]{1,0:T(1,128)}', space=vmem, size = 0x12000, scoped, tag = 'internal scratch']
  %s0 = inlined_call_operand.vmem [shape: f32[128,33], index: 0, kind: input, shape index: {}]
  %s1 = inlined_call_operand.hbm [shape: bf16[33,128], index: 1, kind: input, shape index: {}]
  %s2 = inlined_call_operand.vmem [shape: bf16[128,128], index: 2, kind: input, shape index: {}]
  %s3 = inlined_call_operand.vmem [shape: bf16[128,128], index: 3, kind: input, shape index: {}]
  %s4 = inlined_call_operand.hbm [shape: bf16[128,128], index: 4, kind: input, shape index: {}]
  %s5 = inlined_call_operand.vmem [shape: bf16[8,128], index: 5, kind: input, shape index: {}]
  %s6 = inlined_call_operand.vmem [shape: f32[5,128], index: 6, kind: input, shape index: {}]
  %s7 = inlined_call_operand.vmem [shape: f32[1,1,128], index: 7, kind: output, shape index: {}]
  %s8 = sld [smem:[#allocation0]]
  $region46: #{network_forward.1} parent=0
    _
  %s10 = ssub.s32 1, %s8
  %s11 = scalar_select 0, %s10, %s8
  $region1: #{network_forward.1} parent=0
    #allocation2 [shape = 'u8[10240]{0}', space=vmem, size = 0x2800, scoped, tag = 'input window, operand 1, single buffered']
    #allocation3 [shape = 's32[1]{0}', space=sflag, size = 0x4, scoped, tag = 'scoped memory for network_forward.1']
    #allocation4 [shape = 'u8[32768]{0}', space=vmem, size = 0x8000, scoped, tag = 'input window, operand 4, single buffered']
    #allocation5 [shape = 's32[1]{0}', space=sflag, size = 0x4, scoped, tag = 'scoped memory for network_forward.1']
    %12 = vsyncpa [#allocation3], 0
    %13 = vsyncpa [#allocation5], 0
    // Predicated region
    $region2: #{network_forward.1} parent=1 // pred_check
      _
    $region3: #{network_forward.1} parent=1 // pred_check_branch
      %15 = sbr.rel (0) target = $region5
    $region4: #{network_forward.1} parent=1 // pred_region
      _
    $region5: #{network_forward.1} parent=1 // pred_fallthru
      _
    // Predicated region
    $region6: #{network_forward.1} parent=1 // pred_check
      _
    $region7: #{network_forward.1} parent=1 // pred_check_branch
      %17 = sbr.rel (0) target = $region9
    $region8: #{network_forward.1} parent=1 // pred_region
      %s19 = ssub.s32 320, 320
      %20 = vsyncadd [#allocation3], %s19
      %s21 = sshll.u32 [#allocation2], 4
      %s22 = int_to_ptr.vmem [resolvable:$true] %s21
      %27 = dma.hbm_to_vmem [thread:$0]  %s1, 320, %s22, [#allocation3], 64, 64, 4
    $region9: #{network_forward.1} parent=1 // pred_fallthru
      _
    // Predicated region
    $region10: #{network_forward.1} parent=1 // pred_check
      _
    $region11: #{network_forward.1} parent=1 // pred_check_branch
      %29 = sbr.rel (0) target = $region13
    $region12: #{network_forward.1} parent=1 // pred_region
      _
    $region13: #{network_forward.1} parent=1 // pred_fallthru
      _
    // Predicated region
    $region14: #{network_forward.1} parent=1 // pred_check
      _
    $region15: #{network_forward.1} parent=1 // pred_check_branch
      %31 = sbr.rel (0) target = $region17
    $region16: #{network_forward.1} parent=1 // pred_region
      _
    $region17: #{network_forward.1} parent=1 // pred_fallthru
      _
    // Predicated region
    $region18: #{network_forward.1} parent=1 // pred_check
      _
    $region19: #{network_forward.1} parent=1 // pred_check_branch
      %33 = sbr.rel (0) target = $region21
    $region20: #{network_forward.1} parent=1 // pred_region
      %s35 = ssub.s32 1024, 1024
      %36 = vsyncadd [#allocation5], %s35
      %s37 = sshll.u32 [#allocation4], 4
      %s38 = int_to_ptr.vmem [resolvable:$true] %s37
      %43 = dma.hbm_to_vmem [thread:$0]  %s4, 1024, %s38, [#allocation5], 64, 64, 4
    $region21: #{network_forward.1} parent=1 // pred_fallthru
      _
    // Predicated region
    $region22: #{network_forward.1} parent=1 // pred_check
      _
    $region23: #{network_forward.1} parent=1 // pred_check_branch
      %45 = sbr.rel (0) target = $region25
    $region24: #{network_forward.1} parent=1 // pred_region
      _
    $region25: #{network_forward.1} parent=1 // pred_fallthru
      _
    // Predicated region
    $region26: #{network_forward.1} parent=1 // pred_check
      _
    $region27: #{network_forward.1} parent=1 // pred_check_branch
      %47 = sbr.rel (0) target = $region29
    $region28: #{network_forward.1} parent=1 // pred_region
      _
    $region29: #{network_forward.1} parent=1 // pred_fallthru
      _
    // Predicated region
    $region30: #{network_forward.1} parent=1 // pred_check
      _
    $region31: #{network_forward.1} parent=1 // pred_check_branch
      %49 = sbr.rel (0) target = $region33
    $region32: #{network_forward.1} parent=1 // pred_region
      %50 = dma.done [#allocation3], 320
    $region33: #{network_forward.1} parent=1 // pred_fallthru
      _
    // Predicated region
    $region34: #{network_forward.1} parent=1 // pred_check
      _
    $region35: #{network_forward.1} parent=1 // pred_check_branch
      %52 = sbr.rel (0) target = $region37
    $region36: #{network_forward.1} parent=1 // pred_region
      %53 = dma.done [#allocation5], 1024
    $region37: #{network_forward.1} parent=1 // pred_fallthru
      _
    %v55 = vld [vmem:[%s6] sm:$0x1f]
    %v56 = vld [vmem:[%s0] sm:$0xff]
    %v57 = vld [vmem:[%s0 + $0x8] sm:$0xff]
    %v58 = vld [vmem:[%s0 + $0x10] sm:$0xff]
    %v59 = vld [vmem:[%s0 + $0x18] sm:$0xff]
    %v60 = vld [vmem:[%s0 + $0x20] sm:$0xff]
    %v61 = vld [vmem:[%s0 + $0x28] sm:$0xff]
    %v62 = vld [vmem:[%s0 + $0x30] sm:$0xff]
    %v63 = vld [vmem:[%s0 + $0x38] sm:$0xff]
    %v64 = vld [vmem:[%s0 + $0x40] sm:$0xff]
    %v65 = vld [vmem:[%s0 + $0x48] sm:$0xff]
    %v66 = vld [vmem:[%s0 + $0x50] sm:$0xff]
    %v67 = vld [vmem:[%s0 + $0x58] sm:$0xff]
    %v68 = vld [vmem:[%s0 + $0x60] sm:$0xff]
    %v69 = vld [vmem:[%s0 + $0x68] sm:$0xff]
    %v70 = vld [vmem:[%s0 + $0x70] sm:$0xff]
    %v71 = vld [vmem:[%s0 + $0x78] sm:$0xff]
    %v72 = vpack.c.bf16 %v57, %v56
    %v73 = vpack.c.bf16 %v59, %v58
    %v74 = vpack.c.bf16 %v61, %v60
    %v75 = vpack.c.bf16 %v63, %v62
    %v76 = vpack.c.bf16 %v65, %v64
    %v77 = vpack.c.bf16 %v67, %v66
    %v78 = vpack.c.bf16 %v69, %v68
    %v79 = vpack.c.bf16 %v71, %v70
    %v80 = vld [vmem:[#allocation2] sm:$0xf]
    %v81 = vld [vmem:[#allocation2 + $0x4] sm:$0xf]
    %v82 = vld [vmem:[#allocation2 + $0x8] sm:$0xf]
    %v83 = vld [vmem:[#allocation2 + $0xc] sm:$0xf]
    %v84 = vld [vmem:[#allocation2 + $0x10] sm:$0x1]
    %v85 = vlaneseq
    %v86 = vshrl.u32 %v85, 7
    %v87 = vsub.s32 0, %v86
    %v88 = vrot.slane %v55, %v87
    %v94 = vunpack.c.l.b16 %v80
    %v95 = vunpack.c.l.b16 %v81
    %v96 = vunpack.c.l.b16 %v82
    %v97 = vunpack.c.l.b16 %v83
    %v98 = vunpack.c.l.b16 %v84
    %v99 = vpack.c.b16 %v95, %v94
    %v100 = vpack.c.b16 %v97, %v96
    %v101 = vpack.c.b16 %v98, %v98
    %vm104 = vcmask 269312
    %v106 = vsel %vm104, %v72, 0
    %v109 = vsel %vm104, %v73, 0
    %v112 = vsel %vm104, %v74, 0
    %v115 = vsel %vm104, %v75, 0
    %v118 = vsel %vm104, %v76, 0
    %v121 = vsel %vm104, %v77, 0
    %v124 = vsel %vm104, %v78, 0
    %v127 = vsel %vm104, %v79, 0
    %vm129 = vcmask 1040384
    %v130 = vsel 0, 4294967295, 65535
    %v131 = vsel %vm129, %v130, 0
    %v133 = vand.u32 %v101, %v131
    %135 = vmatprep.subr.bf16.mxu0 0
    %136 = vmatpush1.bf16.msra.mxu0 %v99
    %137 = vmatprep.subr.bf16.mxu0 0
    %138 = vmatpush1.bf16.msra.mxu0 %v100
    %139 = vmatprep.subr.bf16.mxu0 0
    %140 = vmatpush1.bf16.msra.mxu0 %v133
    %141 = vmatprep.subr.bf16.mxu0 0
    %142 = vmatpush1.bf16.msra.mxu0 0
    %143 = vmatprep.subr.bf16.mxu0 0
    %144 = vmatpush1.bf16.msra.mxu0 0
    %145 = vmatprep.subr.bf16.mxu0 0
    %146 = vmatpush1.bf16.msra.mxu0 0
    %147 = vmatprep.subr.bf16.mxu0 0
    %148 = vmatpush1.bf16.msra.mxu0 0
    %149 = vmatprep.subr.bf16.mxu0 0
    %150 = vmatpush1.bf16.msra.mxu0 0
    %151 = vmatprep.subr.bf16.mxu0 0
    %152 = vmatpush1.bf16.msra.mxu0 0
    %153 = vmatprep.subr.bf16.mxu0 0
    %154 = vmatpush1.bf16.msra.mxu0 0
    %155 = vmatprep.subr.bf16.mxu0 0
    %156 = vmatpush1.bf16.msra.mxu0 0
    %157 = vmatprep.subr.bf16.mxu0 0
    %158 = vmatpush1.bf16.msra.mxu0 0
    %159 = vmatprep.subr.bf16.mxu0 0
    %160 = vmatpush1.bf16.msra.mxu0 0
    %161 = vmatprep.subr.bf16.mxu0 0
    %162 = vmatpush1.bf16.msra.mxu0 0
    %163 = vmatprep.subr.bf16.mxu0 0
    %164 = vmatpush1.bf16.msra.mxu0 0
    %165 = vmatprep.subr.bf16.mxu0 0
    %166 = vmatpush1.bf16.msra.mxu0 0
    %167 = vmatprep.mubr.bf16.mxu0 0
    %168 = vmatmul.mubr.bf16.gmra.mrb[0].mxu0 %v106
    %v169 = vpop.f32.mrb[0].mxu0
    %v170 = vadd.f32 %v88, %v169
    %v171 = vpop.f32.mrb[0].mxu0
    %v172 = vpop.f32.mrb[0].mxu0
    %v173 = vadd.f32 %v88, %v172
    %v174 = vpop.f32.mrb[0].mxu0
    %175 = vmatprep.mubr.bf16.mxu0 0
    %176 = vmatmul.mubr.bf16.gmra.mrb[0].mxu0 %v109
    %v177 = vpop.f32.mrb[0].mxu0
    %v178 = vadd.f32 %v88, %v177
    %v179 = vpop.f32.mrb[0].mxu0
    %v180 = vpop.f32.mrb[0].mxu0
    %v181 = vadd.f32 %v88, %v180
    %v182 = vpop.f32.mrb[0].mxu0
    %183 = vmatprep.mubr.bf16.mxu0 0
    %184 = vmatmul.mubr.bf16.gmra.mrb[0].mxu0 %v112
    %v185 = vpop.f32.mrb[0].mxu0
    %v186 = vadd.f32 %v88, %v185
    %v187 = vpop.f32.mrb[0].mxu0
    %v188 = vpop.f32.mrb[0].mxu0
    %v189 = vadd.f32 %v88, %v188
    %v190 = vpop.f32.mrb[0].mxu0
    %191 = vmatprep.mubr.bf16.mxu0 0
    %192 = vmatmul.mubr.bf16.gmra.mrb[0].mxu0 %v115
    %v193 = vpop.f32.mrb[0].mxu0
    %v194 = vadd.f32 %v88, %v193
    %v195 = vpop.f32.mrb[0].mxu0
    %v196 = vpop.f32.mrb[0].mxu0
    %v197 = vadd.f32 %v88, %v196
    %v198 = vpop.f32.mrb[0].mxu0
    %199 = vmatprep.mubr.bf16.mxu0 0
    %200 = vmatmul.mubr.bf16.gmra.mrb[0].mxu0 %v118
    %v201 = vpop.f32.mrb[0].mxu0
    %v202 = vadd.f32 %v88, %v201
    %v203 = vpop.f32.mrb[0].mxu0
    %v204 = vpop.f32.mrb[0].mxu0
    %v205 = vadd.f32 %v88, %v204
    %v206 = vpop.f32.mrb[0].mxu0
    %207 = vmatprep.mubr.bf16.mxu0 0
    %208 = vmatmul.mubr.bf16.gmra.mrb[0].mxu0 %v121
    %v209 = vpop.f32.mrb[0].mxu0
    %v210 = vadd.f32 %v88, %v209
    %v211 = vpop.f32.mrb[0].mxu0
    %v212 = vpop.f32.mrb[0].mxu0
    %v213 = vadd.f32 %v88, %v212
    %v214 = vpop.f32.mrb[0].mxu0
    %215 = vmatprep.mubr.bf16.mxu0 0
    %216 = vmatmul.mubr.bf16.gmra.mrb[0].mxu0 %v124
    %v217 = vpop.f32.mrb[0].mxu0
    %v218 = vadd.f32 %v88, %v217
    %v219 = vpop.f32.mrb[0].mxu0
    %v220 = vpop.f32.mrb[0].mxu0
    %v221 = vadd.f32 %v88, %v220
    %v222 = vpop.f32.mrb[0].mxu0
    %223 = vmatprep.mubr.bf16.mxu0 0
    %224 = vmatmul.mubr.bf16.gmra.mrb[0].mxu0 %v127
    %v225 = vpop.f32.mrb[0].mxu0
    %v226 = vadd.f32 %v88, %v225
    %v227 = vpop.f32.mrb[0].mxu0
    %v228 = vpop.f32.mrb[0].mxu0
    %v229 = vadd.f32 %v88, %v228
    %v230 = vpop.f32.mrb[0].mxu0
    %231 = vdwg.mxu0
    %v232 = vpack.c.bf16 %v173, %v170
    %v233 = vpack.c.bf16 %v181, %v178
    %v234 = vpack.c.bf16 %v189, %v186
    %v235 = vpack.c.bf16 %v197, %v194
    %v236 = vpack.c.bf16 %v205, %v202
    %v237 = vpack.c.bf16 %v213, %v210
    %v238 = vpack.c.bf16 %v221, %v218
    %v239 = vpack.c.bf16 %v229, %v226
    %v240 = vmax.bf16 %v232, 0
    %v241 = vmax.bf16 %v233, 0
    %v242 = vmax.bf16 %v234, 0
    %v243 = vmax.bf16 %v235, 0
    %v244 = vmax.bf16 %v236, 0
    %v245 = vmax.bf16 %v237, 0
    %v246 = vmax.bf16 %v238, 0
    %v247 = vmax.bf16 %v239, 0
    %v248 = vld [vmem:[%s2] sm:$0xf]
    %v249 = vld [vmem:[%s2 + $0x4] sm:$0xf]
    %v250 = vld [vmem:[%s2 + $0x8] sm:$0xf]
    %v251 = vld [vmem:[%s2 + $0xc] sm:$0xf]
    %v252 = vld [vmem:[%s2 + $0x10] sm:$0xf]
    %v253 = vld [vmem:[%s2 + $0x14] sm:$0xf]
    %v254 = vld [vmem:[%s2 + $0x18] sm:$0xf]
    %v255 = vld [vmem:[%s2 + $0x1c] sm:$0xf]
    %v256 = vld [vmem:[%s2 + $0x20] sm:$0xf]
    %v257 = vld [vmem:[%s2 + $0x24] sm:$0xf]
    %v258 = vld [vmem:[%s2 + $0x28] sm:$0xf]
    %v259 = vld [vmem:[%s2 + $0x2c] sm:$0xf]
    %v260 = vld [vmem:[%s2 + $0x30] sm:$0xf]
    %v261 = vld [vmem:[%s2 + $0x34] sm:$0xf]
    %v262 = vld [vmem:[%s2 + $0x38] sm:$0xf]
    %v263 = vld [vmem:[%s2 + $0x3c] sm:$0xf]
    %v264 = vlaneseq
    %v265 = vshrl.u32 %v264, 7
    %v266 = vsub.s32 1, %v265
    %v267 = vrot.slane %v55, %v266
    %v284 = vunpack.c.l.b16 %v248
    %v285 = vunpack.c.l.b16 %v249
    %v286 = vunpack.c.l.b16 %v250
    %v287 = vunpack.c.l.b16 %v251
    %v288 = vunpack.c.l.b16 %v252
    %v289 = vunpack.c.l.b16 %v253
    %v290 = vunpack.c.l.b16 %v254
    %v291 = vunpack.c.l.b16 %v255
    %v292 = vunpack.c.l.b16 %v256
    %v293 = vunpack.c.l.b16 %v257
    %v294 = vunpack.c.l.b16 %v258
    %v295 = vunpack.c.l.b16 %v259
    %v296 = vunpack.c.l.b16 %v260
    %v297 = vunpack.c.l.b16 %v261
    %v298 = vunpack.c.l.b16 %v262
    %v299 = vunpack.c.l.b16 %v263
    %v300 = vpack.c.b16 %v285, %v284
    %v301 = vpack.c.b16 %v287, %v286
    %v302 = vpack.c.b16 %v289, %v288
    %v303 = vpack.c.b16 %v291, %v290
    %v304 = vpack.c.b16 %v293, %v292
    %v305 = vpack.c.b16 %v295, %v294
    %v306 = vpack.c.b16 %v297, %v296
    %v307 = vpack.c.b16 %v299, %v298
    %316 = vmatprep.subr.bf16.mxu0 0
    %317 = vmatpush1.bf16.msra.mxu0 %v300
    %318 = vmatprep.subr.bf16.mxu0 0
    %319 = vmatpush1.bf16.msra.mxu0 %v301
    %320 = vmatprep.subr.bf16.mxu0 0
    %321 = vmatpush1.bf16.msra.mxu0 %v302
    %322 = vmatprep.subr.bf16.mxu0 0
    %323 = vmatpush1.bf16.msra.mxu0 %v303
    %324 = vmatprep.subr.bf16.mxu0 0
    %325 = vmatpush1.bf16.msra.mxu0 %v304
    %326 = vmatprep.subr.bf16.mxu0 0
    %327 = vmatpush1.bf16.msra.mxu0 %v305
    %328 = vmatprep.subr.bf16.mxu0 0
    %329 = vmatpush1.bf16.msra.mxu0 %v306
    %330 = vmatprep.subr.bf16.mxu0 0
    %331 = vmatpush1.bf16.msra.mxu0 %v307
    %332 = vmatprep.subr.bf16.mxu0 0
    %333 = vmatpush1.bf16.msra.mxu0 0
    %334 = vmatprep.subr.bf16.mxu0 0
    %335 = vmatpush1.bf16.msra.mxu0 0
    %336 = vmatprep.subr.bf16.mxu0 0
    %337 = vmatpush1.bf16.msra.mxu0 0
    %338 = vmatprep.subr.bf16.mxu0 0
    %339 = vmatpush1.bf16.msra.mxu0 0
    %340 = vmatprep.subr.bf16.mxu0 0
    %341 = vmatpush1.bf16.msra.mxu0 0
    %342 = vmatprep.subr.bf16.mxu0 0
    %343 = vmatpush1.bf16.msra.mxu0 0
    %344 = vmatprep.subr.bf16.mxu0 0
    %345 = vmatpush1.bf16.msra.mxu0 0
    %346 = vmatprep.subr.bf16.mxu0 0
    %347 = vmatpush1.bf16.msra.mxu0 0
    %348 = vmatprep.mubr.bf16.mxu0 0
    %349 = vmatmul.mubr.bf16.gmra.mrb[0].mxu0 %v240
    %v350 = vpop.f32.mrb[0].mxu0
    %v351 = vadd.f32 %v267, %v350
    %v352 = vpop.f32.mrb[0].mxu0
    %v353 = vpop.f32.mrb[0].mxu0
    %v354 = vadd.f32 %v267, %v353
    %v355 = vpop.f32.mrb[0].mxu0
    %356 = vmatprep.mubr.bf16.mxu0 0
    %357 = vmatmul.mubr.bf16.gmra.mrb[0].mxu0 %v241
    %v358 = vpop.f32.mrb[0].mxu0
    %v359 = vadd.f32 %v267, %v358
    %v360 = vpop.f32.mrb[0].mxu0
    %v361 = vpop.f32.mrb[0].mxu0
    %v362 = vadd.f32 %v267, %v361
    %v363 = vpop.f32.mrb[0].mxu0
    %364 = vmatprep.mubr.bf16.mxu0 0
    %365 = vmatmul.mubr.bf16.gmra.mrb[0].mxu0 %v242
    %v366 = vpop.f32.mrb[0].mxu0
    %v367 = vadd.f32 %v267, %v366
    %v368 = vpop.f32.mrb[0].mxu0
    %v369 = vpop.f32.mrb[0].mxu0
    %v370 = vadd.f32 %v267, %v369
    %v371 = vpop.f32.mrb[0].mxu0
    %372 = vmatprep.mubr.bf16.mxu0 0
    %373 = vmatmul.mubr.bf16.gmra.mrb[0].mxu0 %v243
    %v374 = vpop.f32.mrb[0].mxu0
    %v375 = vadd.f32 %v267, %v374
    %v376 = vpop.f32.mrb[0].mxu0
    %v377 = vpop.f32.mrb[0].mxu0
    %v378 = vadd.f32 %v267, %v377
    %v379 = vpop.f32.mrb[0].mxu0
    %380 = vmatprep.mubr.bf16.mxu0 0
    %381 = vmatmul.mubr.bf16.gmra.mrb[0].mxu0 %v244
    %v382 = vpop.f32.mrb[0].mxu0
    %v383 = vadd.f32 %v267, %v382
    %v384 = vpop.f32.mrb[0].mxu0
    %v385 = vpop.f32.mrb[0].mxu0
    %v386 = vadd.f32 %v267, %v385
    %v387 = vpop.f32.mrb[0].mxu0
    %388 = vmatprep.mubr.bf16.mxu0 0
    %389 = vmatmul.mubr.bf16.gmra.mrb[0].mxu0 %v245
    %v390 = vpop.f32.mrb[0].mxu0
    %v391 = vadd.f32 %v267, %v390
    %v392 = vpop.f32.mrb[0].mxu0
    %v393 = vpop.f32.mrb[0].mxu0
    %v394 = vadd.f32 %v267, %v393
    %v395 = vpop.f32.mrb[0].mxu0
    %396 = vmatprep.mubr.bf16.mxu0 0
    %397 = vmatmul.mubr.bf16.gmra.mrb[0].mxu0 %v246
    %v398 = vpop.f32.mrb[0].mxu0
    %v399 = vadd.f32 %v267, %v398
    %v400 = vpop.f32.mrb[0].mxu0
    %v401 = vpop.f32.mrb[0].mxu0
    %v402 = vadd.f32 %v267, %v401
    %v403 = vpop.f32.mrb[0].mxu0
    %404 = vmatprep.mubr.bf16.mxu0 0
    %405 = vmatmul.mubr.bf16.gmra.mrb[0].mxu0 %v247
    %v406 = vpop.f32.mrb[0].mxu0
    %v407 = vadd.f32 %v267, %v406
    %v408 = vpop.f32.mrb[0].mxu0
    %v409 = vpop.f32.mrb[0].mxu0
    %v410 = vadd.f32 %v267, %v409
    %v411 = vpop.f32.mrb[0].mxu0
    %412 = vdwg.mxu0
    %v413 = vpack.c.bf16 %v354, %v351
    %v414 = vpack.c.bf16 %v362, %v359
    %v415 = vpack.c.bf16 %v370, %v367
    %v416 = vpack.c.bf16 %v378, %v375
    %v417 = vpack.c.bf16 %v386, %v383
    %v418 = vpack.c.bf16 %v394, %v391
    %v419 = vpack.c.bf16 %v402, %v399
    %v420 = vpack.c.bf16 %v410, %v407
    %v421 = vmax.bf16 %v413, 0
    %v422 = vmax.bf16 %v414, 0
    %v423 = vmax.bf16 %v415, 0
    %v424 = vmax.bf16 %v416, 0
    %v425 = vmax.bf16 %v417, 0
    %v426 = vmax.bf16 %v418, 0
    %v427 = vmax.bf16 %v419, 0
    %v428 = vmax.bf16 %v420, 0
    %v429 = vld [vmem:[%s3] sm:$0xf]
    %v430 = vld [vmem:[%s3 + $0x4] sm:$0xf]
    %v431 = vld [vmem:[%s3 + $0x8] sm:$0xf]
    %v432 = vld [vmem:[%s3 + $0xc] sm:$0xf]
    %v433 = vld [vmem:[%s3 + $0x10] sm:$0xf]
    %v434 = vld [vmem:[%s3 + $0x14] sm:$0xf]
    %v435 = vld [vmem:[%s3 + $0x18] sm:$0xf]
    %v436 = vld [vmem:[%s3 + $0x1c] sm:$0xf]
    %v437 = vld [vmem:[%s3 + $0x20] sm:$0xf]
    %v438 = vld [vmem:[%s3 + $0x24] sm:$0xf]
    %v439 = vld [vmem:[%s3 + $0x28] sm:$0xf]
    %v440 = vld [vmem:[%s3 + $0x2c] sm:$0xf]
    %v441 = vld [vmem:[%s3 + $0x30] sm:$0xf]
    %v442 = vld [vmem:[%s3 + $0x34] sm:$0xf]
    %v443 = vld [vmem:[%s3 + $0x38] sm:$0xf]
    %v444 = vld [vmem:[%s3 + $0x3c] sm:$0xf]
    %v445 = vlaneseq
    %v446 = vshrl.u32 %v445, 7
    %v447 = vsub.s32 2, %v446
    %v448 = vrot.slane %v55, %v447
    %v465 = vunpack.c.l.b16 %v429
    %v466 = vunpack.c.l.b16 %v430
    %v467 = vunpack.c.l.b16 %v431
    %v468 = vunpack.c.l.b16 %v432
    %v469 = vunpack.c.l.b16 %v433
    %v470 = vunpack.c.l.b16 %v434
    %v471 = vunpack.c.l.b16 %v435
    %v472 = vunpack.c.l.b16 %v436
    %v473 = vunpack.c.l.b16 %v437
    %v474 = vunpack.c.l.b16 %v438
    %v475 = vunpack.c.l.b16 %v439
    %v476 = vunpack.c.l.b16 %v440
    %v477 = vunpack.c.l.b16 %v441
    %v478 = vunpack.c.l.b16 %v442
    %v479 = vunpack.c.l.b16 %v443
    %v480 = vunpack.c.l.b16 %v444
    %v481 = vpack.c.b16 %v466, %v465
    %v482 = vpack.c.b16 %v468, %v467
    %v483 = vpack.c.b16 %v470, %v469
    %v484 = vpack.c.b16 %v472, %v471
    %v485 = vpack.c.b16 %v474, %v473
    %v486 = vpack.c.b16 %v476, %v475
    %v487 = vpack.c.b16 %v478, %v477
    %v488 = vpack.c.b16 %v480, %v479
    %497 = vmatprep.subr.bf16.mxu0 0
    %498 = vmatpush1.bf16.msra.mxu0 %v481
    %499 = vmatprep.subr.bf16.mxu0 0
    %500 = vmatpush1.bf16.msra.mxu0 %v482
    %501 = vmatprep.subr.bf16.mxu0 0
    %502 = vmatpush1.bf16.msra.mxu0 %v483
    %503 = vmatprep.subr.bf16.mxu0 0
    %504 = vmatpush1.bf16.msra.mxu0 %v484
    %505 = vmatprep.subr.bf16.mxu0 0
    %506 = vmatpush1.bf16.msra.mxu0 %v485
    %507 = vmatprep.subr.bf16.mxu0 0
    %508 = vmatpush1.bf16.msra.mxu0 %v486
    %509 = vmatprep.subr.bf16.mxu0 0
    %510 = vmatpush1.bf16.msra.mxu0 %v487
    %511 = vmatprep.subr.bf16.mxu0 0
    %512 = vmatpush1.bf16.msra.mxu0 %v488
    %513 = vmatprep.subr.bf16.mxu0 0
    %514 = vmatpush1.bf16.msra.mxu0 0
    %515 = vmatprep.subr.bf16.mxu0 0
    %516 = vmatpush1.bf16.msra.mxu0 0
    %517 = vmatprep.subr.bf16.mxu0 0
    %518 = vmatpush1.bf16.msra.mxu0 0
    %519 = vmatprep.subr.bf16.mxu0 0
    %520 = vmatpush1.bf16.msra.mxu0 0
    %521 = vmatprep.subr.bf16.mxu0 0
    %522 = vmatpush1.bf16.msra.mxu0 0
    %523 = vmatprep.subr.bf16.mxu0 0
    %524 = vmatpush1.bf16.msra.mxu0 0
    %525 = vmatprep.subr.bf16.mxu0 0
    %526 = vmatpush1.bf16.msra.mxu0 0
    %527 = vmatprep.subr.bf16.mxu0 0
    %528 = vmatpush1.bf16.msra.mxu0 0
    %529 = vmatprep.mubr.bf16.mxu0 0
    %530 = vmatmul.mubr.bf16.gmra.mrb[0].mxu0 %v421
    %v531 = vpop.f32.mrb[0].mxu0
    %v532 = vadd.f32 %v448, %v531
    %v533 = vpop.f32.mrb[0].mxu0
    %v534 = vpop.f32.mrb[0].mxu0
    %v535 = vadd.f32 %v448, %v534
    %v536 = vpop.f32.mrb[0].mxu0
    %537 = vmatprep.mubr.bf16.mxu0 0
    %538 = vmatmul.mubr.bf16.gmra.mrb[0].mxu0 %v422
    %v539 = vpop.f32.mrb[0].mxu0
    %v540 = vadd.f32 %v448, %v539
    %v541 = vpop.f32.mrb[0].mxu0
    %v542 = vpop.f32.mrb[0].mxu0
    %v543 = vadd.f32 %v448, %v542
    %v544 = vpop.f32.mrb[0].mxu0
    %545 = vmatprep.mubr.bf16.mxu0 0
    %546 = vmatmul.mubr.bf16.gmra.mrb[0].mxu0 %v423
    %v547 = vpop.f32.mrb[0].mxu0
    %v548 = vadd.f32 %v448, %v547
    %v549 = vpop.f32.mrb[0].mxu0
    %v550 = vpop.f32.mrb[0].mxu0
    %v551 = vadd.f32 %v448, %v550
    %v552 = vpop.f32.mrb[0].mxu0
    %553 = vmatprep.mubr.bf16.mxu0 0
    %554 = vmatmul.mubr.bf16.gmra.mrb[0].mxu0 %v424
    %v555 = vpop.f32.mrb[0].mxu0
    %v556 = vadd.f32 %v448, %v555
    %v557 = vpop.f32.mrb[0].mxu0
    %v558 = vpop.f32.mrb[0].mxu0
    %v559 = vadd.f32 %v448, %v558
    %v560 = vpop.f32.mrb[0].mxu0
    %561 = vmatprep.mubr.bf16.mxu0 0
    %562 = vmatmul.mubr.bf16.gmra.mrb[0].mxu0 %v425
    %v563 = vpop.f32.mrb[0].mxu0
    %v564 = vadd.f32 %v448, %v563
    %v565 = vpop.f32.mrb[0].mxu0
    %v566 = vpop.f32.mrb[0].mxu0
    %v567 = vadd.f32 %v448, %v566
    %v568 = vpop.f32.mrb[0].mxu0
    %569 = vmatprep.mubr.bf16.mxu0 0
    %570 = vmatmul.mubr.bf16.gmra.mrb[0].mxu0 %v426
    %v571 = vpop.f32.mrb[0].mxu0
    %v572 = vadd.f32 %v448, %v571
    %v573 = vpop.f32.mrb[0].mxu0
    %v574 = vpop.f32.mrb[0].mxu0
    %v575 = vadd.f32 %v448, %v574
    %v576 = vpop.f32.mrb[0].mxu0
    %577 = vmatprep.mubr.bf16.mxu0 0
    %578 = vmatmul.mubr.bf16.gmra.mrb[0].mxu0 %v427
    %v579 = vpop.f32.mrb[0].mxu0
    %v580 = vadd.f32 %v448, %v579
    %v581 = vpop.f32.mrb[0].mxu0
    %v582 = vpop.f32.mrb[0].mxu0
    %v583 = vadd.f32 %v448, %v582
    %v584 = vpop.f32.mrb[0].mxu0
    %585 = vmatprep.mubr.bf16.mxu0 0
    %586 = vmatmul.mubr.bf16.gmra.mrb[0].mxu0 %v428
    %v587 = vpop.f32.mrb[0].mxu0
    %v588 = vadd.f32 %v448, %v587
    %v589 = vpop.f32.mrb[0].mxu0
    %v590 = vpop.f32.mrb[0].mxu0
    %v591 = vadd.f32 %v448, %v590
    %v592 = vpop.f32.mrb[0].mxu0
    %593 = vdwg.mxu0
    %v594 = vpack.c.bf16 %v535, %v532
    %v595 = vpack.c.bf16 %v543, %v540
    %v596 = vpack.c.bf16 %v551, %v548
    %v597 = vpack.c.bf16 %v559, %v556
    %v598 = vpack.c.bf16 %v567, %v564
    %v599 = vpack.c.bf16 %v575, %v572
    %v600 = vpack.c.bf16 %v583, %v580
    %v601 = vpack.c.bf16 %v591, %v588
    %v602 = vmax.bf16 %v594, 0
    %v603 = vmax.bf16 %v595, 0
    %v604 = vmax.bf16 %v596, 0
    %v605 = vmax.bf16 %v597, 0
    %v606 = vmax.bf16 %v598, 0
    %v607 = vmax.bf16 %v599, 0
    %v608 = vmax.bf16 %v600, 0
    %v609 = vmax.bf16 %v601, 0
    %v610 = vld [vmem:[#allocation4] sm:$0xf]
    %v611 = vld [vmem:[#allocation4 + $0x4] sm:$0xf]
    %v612 = vld [vmem:[#allocation4 + $0x8] sm:$0xf]
    %v613 = vld [vmem:[#allocation4 + $0xc] sm:$0xf]
    %v614 = vld [vmem:[#allocation4 + $0x10] sm:$0xf]
    %v615 = vld [vmem:[#allocation4 + $0x14] sm:$0xf]
    %v616 = vld [vmem:[#allocation4 + $0x18] sm:$0xf]
    %v617 = vld [vmem:[#allocation4 + $0x1c] sm:$0xf]
    %v618 = vld [vmem:[#allocation4 + $0x20] sm:$0xf]
    %v619 = vld [vmem:[#allocation4 + $0x24] sm:$0xf]
    %v620 = vld [vmem:[#allocation4 + $0x28] sm:$0xf]
    %v621 = vld [vmem:[#allocation4 + $0x2c] sm:$0xf]
    %v622 = vld [vmem:[#allocation4 + $0x30] sm:$0xf]
    %v623 = vld [vmem:[#allocation4 + $0x34] sm:$0xf]
    %v624 = vld [vmem:[#allocation4 + $0x38] sm:$0xf]
    %v625 = vld [vmem:[#allocation4 + $0x3c] sm:$0xf]
    %v626 = vlaneseq
    %v627 = vshrl.u32 %v626, 7
    %v628 = vsub.s32 3, %v627
    %v629 = vrot.slane %v55, %v628
    %v646 = vunpack.c.l.b16 %v610
    %v647 = vunpack.c.l.b16 %v611
    %v648 = vunpack.c.l.b16 %v612
    %v649 = vunpack.c.l.b16 %v613
    %v650 = vunpack.c.l.b16 %v614
    %v651 = vunpack.c.l.b16 %v615
    %v652 = vunpack.c.l.b16 %v616
    %v653 = vunpack.c.l.b16 %v617
    %v654 = vunpack.c.l.b16 %v618
    %v655 = vunpack.c.l.b16 %v619
    %v656 = vunpack.c.l.b16 %v620
    %v657 = vunpack.c.l.b16 %v621
    %v658 = vunpack.c.l.b16 %v622
    %v659 = vunpack.c.l.b16 %v623
    %v660 = vunpack.c.l.b16 %v624
    %v661 = vunpack.c.l.b16 %v625
    %v662 = vpack.c.b16 %v647, %v646
    %v663 = vpack.c.b16 %v649, %v648
    %v664 = vpack.c.b16 %v651, %v650
    %v665 = vpack.c.b16 %v653, %v652
    %v666 = vpack.c.b16 %v655, %v654
    %v667 = vpack.c.b16 %v657, %v656
    %v668 = vpack.c.b16 %v659, %v658
    %v669 = vpack.c.b16 %v661, %v660
    %678 = vmatprep.subr.bf16.mxu0 0
    %679 = vmatpush1.bf16.msra.mxu0 %v662
    %680 = vmatprep.subr.bf16.mxu0 0
    %681 = vmatpush1.bf16.msra.mxu0 %v663
    %682 = vmatprep.subr.bf16.mxu0 0
    %683 = vmatpush1.bf16.msra.mxu0 %v664
    %684 = vmatprep.subr.bf16.mxu0 0
    %685 = vmatpush1.bf16.msra.mxu0 %v665
    %686 = vmatprep.subr.bf16.mxu0 0
    %687 = vmatpush1.bf16.msra.mxu0 %v666
    %688 = vmatprep.subr.bf16.mxu0 0
    %689 = vmatpush1.bf16.msra.mxu0 %v667
    %690 = vmatprep.subr.bf16.mxu0 0
    %691 = vmatpush1.bf16.msra.mxu0 %v668
    %692 = vmatprep.subr.bf16.mxu0 0
    %693 = vmatpush1.bf16.msra.mxu0 %v669
    %694 = vmatprep.subr.bf16.mxu0 0
    %695 = vmatpush1.bf16.msra.mxu0 0
    %696 = vmatprep.subr.bf16.mxu0 0
    %697 = vmatpush1.bf16.msra.mxu0 0
    %698 = vmatprep.subr.bf16.mxu0 0
    %699 = vmatpush1.bf16.msra.mxu0 0
    %700 = vmatprep.subr.bf16.mxu0 0
    %701 = vmatpush1.bf16.msra.mxu0 0
    %702 = vmatprep.subr.bf16.mxu0 0
    %703 = vmatpush1.bf16.msra.mxu0 0
    %704 = vmatprep.subr.bf16.mxu0 0
    %705 = vmatpush1.bf16.msra.mxu0 0
    %706 = vmatprep.subr.bf16.mxu0 0
    %707 = vmatpush1.bf16.msra.mxu0 0
    %708 = vmatprep.subr.bf16.mxu0 0
    %709 = vmatpush1.bf16.msra.mxu0 0
    %710 = vmatprep.mubr.bf16.mxu0 0
    %711 = vmatmul.mubr.bf16.gmra.mrb[0].mxu0 %v602
    %v712 = vpop.f32.mrb[0].mxu0
    %v713 = vadd.f32 %v629, %v712
    %v714 = vpop.f32.mrb[0].mxu0
    %v715 = vpop.f32.mrb[0].mxu0
    %v716 = vadd.f32 %v629, %v715
    %v717 = vpop.f32.mrb[0].mxu0
    %718 = vmatprep.mubr.bf16.mxu0 0
    %719 = vmatmul.mubr.bf16.gmra.mrb[0].mxu0 %v603
    %v720 = vpop.f32.mrb[0].mxu0
    %v721 = vadd.f32 %v629, %v720
    %v722 = vpop.f32.mrb[0].mxu0
    %v723 = vpop.f32.mrb[0].mxu0
    %v724 = vadd.f32 %v629, %v723
    %v725 = vpop.f32.mrb[0].mxu0
    %726 = vmatprep.mubr.bf16.mxu0 0
    %727 = vmatmul.mubr.bf16.gmra.mrb[0].mxu0 %v604
    %v728 = vpop.f32.mrb[0].mxu0
    %v729 = vadd.f32 %v629, %v728
    %v730 = vpop.f32.mrb[0].mxu0
    %v731 = vpop.f32.mrb[0].mxu0
    %v732 = vadd.f32 %v629, %v731
    %v733 = vpop.f32.mrb[0].mxu0
    %734 = vmatprep.mubr.bf16.mxu0 0
    %735 = vmatmul.mubr.bf16.gmra.mrb[0].mxu0 %v605
    %v736 = vpop.f32.mrb[0].mxu0
    %v737 = vadd.f32 %v629, %v736
    %v738 = vpop.f32.mrb[0].mxu0
    %v739 = vpop.f32.mrb[0].mxu0
    %v740 = vadd.f32 %v629, %v739
    %v741 = vpop.f32.mrb[0].mxu0
    %742 = vmatprep.mubr.bf16.mxu0 0
    %743 = vmatmul.mubr.bf16.gmra.mrb[0].mxu0 %v606
    %v744 = vpop.f32.mrb[0].mxu0
    %v745 = vadd.f32 %v629, %v744
    %v746 = vpop.f32.mrb[0].mxu0
    %v747 = vpop.f32.mrb[0].mxu0
    %v748 = vadd.f32 %v629, %v747
    %v749 = vpop.f32.mrb[0].mxu0
    %750 = vmatprep.mubr.bf16.mxu0 0
    %751 = vmatmul.mubr.bf16.gmra.mrb[0].mxu0 %v607
    %v752 = vpop.f32.mrb[0].mxu0
    %v753 = vadd.f32 %v629, %v752
    %v754 = vpop.f32.mrb[0].mxu0
    %v755 = vpop.f32.mrb[0].mxu0
    %v756 = vadd.f32 %v629, %v755
    %v757 = vpop.f32.mrb[0].mxu0
    %758 = vmatprep.mubr.bf16.mxu0 0
    %759 = vmatmul.mubr.bf16.gmra.mrb[0].mxu0 %v608
    %v760 = vpop.f32.mrb[0].mxu0
    %v761 = vadd.f32 %v629, %v760
    %v762 = vpop.f32.mrb[0].mxu0
    %v763 = vpop.f32.mrb[0].mxu0
    %v764 = vadd.f32 %v629, %v763
    %v765 = vpop.f32.mrb[0].mxu0
    %766 = vmatprep.mubr.bf16.mxu0 0
    %767 = vmatmul.mubr.bf16.gmra.mrb[0].mxu0 %v609
    %v768 = vpop.f32.mrb[0].mxu0
    %v769 = vadd.f32 %v629, %v768
    %v770 = vpop.f32.mrb[0].mxu0
    %v771 = vpop.f32.mrb[0].mxu0
    %v772 = vadd.f32 %v629, %v771
    %v773 = vpop.f32.mrb[0].mxu0
    %774 = vdwg.mxu0
    %v775 = vpack.c.bf16 %v716, %v713
    %v776 = vpack.c.bf16 %v724, %v721
    %v777 = vpack.c.bf16 %v732, %v729
    %v778 = vpack.c.bf16 %v740, %v737
    %v779 = vpack.c.bf16 %v748, %v745
    %v780 = vpack.c.bf16 %v756, %v753
    %v781 = vpack.c.bf16 %v764, %v761
    %v782 = vpack.c.bf16 %v772, %v769
    %v783 = vmax.bf16 %v775, 0
    %v784 = vmax.bf16 %v776, 0
    %v785 = vmax.bf16 %v777, 0
    %v786 = vmax.bf16 %v778, 0
    %v787 = vmax.bf16 %v779, 0
    %v788 = vmax.bf16 %v780, 0
    %v789 = vmax.bf16 %v781, 0
    %v790 = vmax.bf16 %v782, 0
    %v791 = vld [vmem:[%s5] sm:$0xf]
    %792 = vmatprep.subr.bf16.mxu0 0
    %793 = vmatpush1.bf16.xpose.msra.mxu0 %v783
    %794 = vmatprep.subr.bf16.mxu0 0
    %795 = vmatpush1.bf16.xpose.msra.mxu0 %v784
    %796 = vmatprep.subr.bf16.mxu0 0
    %797 = vmatpush1.bf16.xpose.msra.mxu0 %v785
    %798 = vmatprep.subr.bf16.mxu0 0
    %799 = vmatpush1.bf16.xpose.msra.mxu0 %v786
    %800 = vmatprep.subr.bf16.mxu0 0
    %801 = vmatpush1.bf16.xpose.msra.mxu0 %v787
    %802 = vmatprep.subr.bf16.mxu0 0
    %803 = vmatpush1.bf16.xpose.msra.mxu0 %v788
    %804 = vmatprep.subr.bf16.mxu0 0
    %805 = vmatpush1.bf16.xpose.msra.mxu0 %v789
    %806 = vmatprep.subr.bf16.mxu0 0
    %807 = vmatpush1.bf16.xpose.msra.mxu0 %v790
    %808 = vmatprep.subr.bf16.mxu0 0
    %809 = vmatpush1.bf16.xpose.msra.mxu0 0
    %810 = vmatprep.subr.bf16.mxu0 0
    %811 = vmatpush1.bf16.xpose.msra.mxu0 0
    %812 = vmatprep.subr.bf16.mxu0 0
    %813 = vmatpush1.bf16.xpose.msra.mxu0 0
    %814 = vmatprep.subr.bf16.mxu0 0
    %815 = vmatpush1.bf16.xpose.msra.mxu0 0
    %816 = vmatprep.subr.bf16.mxu0 0
    %817 = vmatpush1.bf16.xpose.msra.mxu0 0
    %818 = vmatprep.subr.bf16.mxu0 0
    %819 = vmatpush1.bf16.xpose.msra.mxu0 0
    %820 = vmatprep.subr.bf16.mxu0 0
    %821 = vmatpush1.bf16.xpose.msra.mxu0 0
    %822 = vmatprep.subr.bf16.mxu0 0
    %823 = vmatpush1.bf16.xpose.msra.mxu0 0
    %824 = vmatprep.mubr.bf16.mxu0 0
    %825 = vmatmul.mubr.bf16.gmra.mrb[0].mxu0 %v791
    %v826 = vpop.f32.mrb[0].mxu0
    %v827 = vadd.f32 0.0, %v826
    %v828 = vpop.f32.mrb[0].mxu0
    %v829 = vpop.f32.mrb[0].mxu0
    %v830 = vpop.f32.mrb[0].mxu0
    %831 = vdwg.mxu0
    %833 = vset.pattern.permute.xlu0 0
    %834 = vperm.xlu0 %833, %v55
    %v835 = vpop.permute.xlu0 %834
    %v836 = vrot.slane %v835, 4
    %v838 = vadd.f32 %v827, %v836
    %839 = vst [vmem:[%s7] sm:$0x1] %v838
    // Predicated region
    $region38: #{network_forward.1} parent=1 // pred_check
      _
    $region39: #{network_forward.1} parent=1 // pred_check_branch
      %841 = sbr.rel (0) target = $region41
    $region40: #{network_forward.1} parent=1 // pred_region
      _
    $region41: #{network_forward.1} parent=1 // pred_fallthru
      _
    // Predicated region
    $region42: #{network_forward.1} parent=1 // pred_check
      _
    $region43: #{network_forward.1} parent=1 // pred_check_branch
      %843 = sbr.rel (0) target = $region45
    $region44: #{network_forward.1} parent=1 // pred_region
      _
    $region45: #{network_forward.1} parent=1 // pred_fallthru
      _
    %844 = vsyncpa [#allocation3], 1
    %845 = vsyncpa [#allocation5], 1

</llo_original>
